<compile_context>
chip_gen: v7x
topology: tpu7x:2x2x1
jax: 0.10.0
libtpu: 0.0.40
codegen_flags: <defaults>
</compile_context>

<pallas_src>
import math

import jax
import jax.numpy as jnp
from jax.experimental import pallas as pl
from jax.experimental.pallas import tpu as pltpu


# ----------------------------------------------------------------------------
# Small helpers
# ----------------------------------------------------------------------------
def _round_up(x, m):
    return ((x + m - 1) // m) * m


def _spec(shape, index_map, n_buffers=None):
    """BlockSpec, optionally with explicit buffer count (fallback if API absent)."""
    if n_buffers is None:
        return pl.BlockSpec(shape, index_map)
    try:
        return pl.BlockSpec(shape, index_map, pipeline_mode=pl.Buffered(n_buffers))
    except Exception:
        return pl.BlockSpec(shape, index_map)


def _vmem_capacity_bytes():
    try:
        return int(pltpu.get_tpu_info().vmem_capacity_bytes)
    except Exception:
        return 64 << 20        # conservative (v7x per-TensorCore VMEM)


def _working_set_bytes(tT, tV, H, out_w):
    """Rough peak-VMEM model for one grid step (used for tile selection)."""
    lane = 128
    return int(
        tT * H * 2                 # ctx tile (bf16, single-buffered)
        + tT * lane * 4            # labels (int32, lane-padded)
        + H * H * 2 + 8 * H * 4    # dense_w + small param rows (single-buffered)
        + 2 * tV * H * 2           # embedding row tiles (double-buffered stream)
        + 2 * max(tV, lane) * 4    # decoder-bias tiles
        + tT * H * 2               # h_sc scratch (bf16)
        + 3 * tT * lane * 4        # m/s/label accumulators (lane-padded f32)
        + 2 * tT * tV * 4          # logits + exp intermediates (f32)
        + 3 * tT * out_w * 4       # finalize segment-select temporaries
        + 4 * out_w * 4            # output tile
        + (2 << 20)                # compiler slop
    )


def _pick_tiles(n_inst, L, H, V, budget_bytes):
    """Choose (token_tile, vocab_tile, padded_vocab).  Token tile is maximized first
    (it sets how many times the (V,H) embedding is re-streamed from HBM), then the
    vocab tile, both under a VMEM budget."""
    T = n_inst * L
    inst_divs = [d for d in range(n_inst, 0, -1) if n_inst % d == 0]
    for d in inst_divs:                                  # largest token tile first
        tT = d * L
        if tT > 4096:
            continue
        if tT != T and tT % 16 != 0:                     # bf16 sublane packing
            continue
        out_w = _round_up(max(d, 1), 128)
        for tV in (2048, 1024, 512, 256, 128):
            V_pad = _round_up(V, tV)
            if tV > 128 and (V_pad - V) * 25 > V:        # >4% pad waste -> smaller tV
                continue
            if _working_set_bytes(tT, tV, H, out_w) <= budget_bytes:
                return tT, tV, V_pad
    # Fallback: smallest legal tiling, even if above the soft budget.
    for d in sorted(inst_divs):
        tT = d * L
        if tT == T or tT % 16 == 0:
            return tT, 128, _round_up(V, 128)
    return T, 128, _round_up(V, 128)


# ----------------------------------------------------------------------------
# Kernel: BertLMPredictionHead (dense -> gelu -> layernorm -> tied-embedding
#         decoder), ONLINE log-softmax over streamed vocab tiles, per-token
#         label pickup, masked per-instance mean -> lane-dense pred tile
# ----------------------------------------------------------------------------
def _make_lm_head_kernel(seq_len, insts_per_tile, vocab_tile, out_width, ln_eps=1e-12):
    t_tokens = insts_per_tile * seq_len

    def kernel(ctx_ref, labels_ref, dense_w_ref, dense_b_ref,
               ln_g_ref, ln_b_ref, emb_ref, dec_b_ref,
               pred_ref, h_sc, m_sc, s_sc, lab_sc):
        v = pl.program_id(1)

        # ---- once per token tile: Linear + gelu(erf) + LayerNorm(eps=1e-12),
        #      cached in bf16 scratch; online-softmax accumulators initialized.
        @pl.when(v == 0)
        def _():
            h = jnp.dot(ctx_ref[...], dense_w_ref[...],          # bf16 x bf16 -> f32
                        preferred_element_type=jnp.float32)
            h = h + dense_b_ref[...]
            h = 0.5 * h * (1.0 + jax.lax.erf(h * 0.7071067811865476))
            mu = jnp.mean(h, axis=-1, keepdims=True)
            var = jnp.mean((h - mu) * (h - mu), axis=-1, keepdims=True)
            h = (h - mu) * jax.lax.rsqrt(var + ln_eps)
            h = h * ln_g_ref[...] + ln_b_ref[...]
            h_sc[...] = h.astype(jnp.bfloat16)
            m_sc[...] = jnp.full(m_sc.shape, -jnp.inf, jnp.float32)
            s_sc[...] = jnp.zeros(s_sc.shape, jnp.float32)
            lab_sc[...] = jnp.zeros(lab_sc.shape, jnp.float32)

        # ---- streamed decoder tile: h @ emb_tile^T (bf16 MXU, f32 accumulate).
        #      emb tile is (tV, H) rows of the tied embedding -> contiguous HBM DMA.
        # TODO(synk): if the bundle dump shows per-step vxpose from the RHS-contracted
        # matmul, pre-transpose word_emb to (H, V_pad) once in the wrapper instead.
        logits = jax.lax.dot_general(
            h_sc[...], emb_ref[...],
            dimension_numbers=(((1,), (1,)), ((), ())),
            preferred_element_type=jnp.float32)
        logits = logits + dec_b_ref[...]                          # (tT, tV)

        labels = labels_ref[...]                                  # (tT, 1) int32

        # ---- online log-sum-exp over the vocab stream
        m_prev = m_sc[...]
        m_new = jnp.maximum(m_prev, jnp.max(logits, axis=-1, keepdims=True))
        s_sc[...] = (s_sc[...] * jnp.exp(m_prev - m_new)
                     + jnp.sum(jnp.exp(logits - m_new), axis=-1, keepdims=True))
        m_sc[...] = m_new

        # ---- pick up the raw logit at each token's label index: compare the LOCAL
        #      column iota against (label - tile offset) -- the offset shift is a
        #      (tT,1) op, saving a full (tT,tV) pass per step.
        target = labels - v * vocab_tile                          # (tT, 1)
        col = jax.lax.broadcasted_iota(jnp.int32, logits.shape, 1)
        lab_sc[...] = lab_sc[...] + jnp.sum(
            jnp.where(col == target, logits, 0.0), axis=-1, keepdims=True)

        # ---- finalize: log p(label) per token, masked per-instance mean.
        @pl.when(v == pl.num_programs(1) - 1)
        def _():
            lse = m_sc[...] + jnp.log(s_sc[...])                  # (tT, 1)
            label_lp = lab_sc[...] - lse                          # (tT, 1) log p(label)
            mask = (labels != 0).astype(jnp.float32)              # (tT, 1)
            masked_lp = label_lp * mask

            # token -> instance reduction (tokens are instance-major, seq_len per inst);
            # instances live in lanes 0..insts_per_tile-1 of a 128-padded slab.
            tok = jax.lax.broadcasted_iota(jnp.int32, (t_tokens, out_width), 0)
            inst = jax.lax.broadcasted_iota(jnp.int32, (t_tokens, out_width), 1)
            sel = (tok >= inst * seq_len) & (tok < (inst + 1) * seq_len)

            num = jnp.sum(jnp.where(sel, masked_lp, 0.0), axis=0, keepdims=True)
            den = jnp.sum(jnp.where(sel, mask, 0.0), axis=0, keepdims=True)
            lane = jax.lax.broadcasted_iota(jnp.int32, (1, out_width), 1)
            den = jnp.where(lane < insts_per_tile, den, 1.0)      # keep pad lanes finite
            # Exact division (matches reference; den==0 for a REAL instance still yields
            # non-finite, exactly like the reference -- harness guarantees den >= 1).
            pred_ref[...] = (num / den).reshape(1, 1, out_width)

    return kernel


# ----------------------------------------------------------------------------
# JAX glue
# ----------------------------------------------------------------------------
def lm_prediction_head_and_score(ctx, input_labels, params):
    """ctx: (N, L, H) f32, input_labels: (N, L) int32 -> pred_logits (N,) f32."""
    n, L, H = ctx.shape
    V = params["word_emb"].shape[0]
    T = n * L

    phys_vmem = _vmem_capacity_bytes()
    tT, tV, V_pad = _pick_tiles(n, L, H, V, int(phys_vmem * 0.55))
    num_t_tiles = T // tT
    num_v_tiles = V_pad // tV
    insts_per_tile = tT // L
    out_w = _round_up(max(insts_per_tile, 1), 128)          # lane-dense output slab

    ctx2d = ctx.reshape(T, H).astype(jnp.bfloat16)           # bf16 MXU operand
    labels2d = input_labels.reshape(T, 1).astype(jnp.int32)

    word_emb = params["word_emb"].astype(jnp.bfloat16)       # (V, H) -- no host transpose
    dec_bias = params["dec_bias"].astype(jnp.float32)
    if V_pad != V:
        # Pad vocab: zero embedding rows + large-negative bias so padded columns
        # contribute exp(~-1e30)=0 to the softmax and can never be a label.
        word_emb = jnp.pad(word_emb, ((0, V_pad - V), (0, 0)))
        dec_bias = jnp.pad(dec_bias, (0, V_pad - V), constant_values=-1e30)

    kernel = _make_lm_head_kernel(L, insts_per_tile, tV, out_w)

    ws = _working_set_bytes(tT, tV, H, out_w)
    vmem_limit = int(max(32 << 20, min(phys_vmem - (8 << 20), ws + (16 << 20))))

    cost = pl.CostEstimate(
        flops=2 * T * H * H + 2 * T * H * V_pad,
        transcendentals=T * V_pad + 4 * T * H,
        bytes_accessed=(T * H * 2 + T * 4 + H * H * 2 + 4 * H * 4
                        + num_t_tiles * (V_pad * H * 2 + V_pad * 4)
                        + num_t_tiles * out_w * 4),
    )

    # TODO(synk): on v7x consider forcing num_t_tiles to stay even (or CORE_PARALLEL on
    # the token axis) so both TensorCores get work; and on v5e consider Buffered(3) on
    # the embedding stream if its DMA is still exposed.
    # TODO(synk): the three (tT,1) accumulators could be packed into one (tT,128) scratch
    # to reclaim lane padding when tiles are pushed to the v7x VMEM limit.
    grid_spec = pltpu.PrefetchScalarGridSpec(
        num_scalar_prefetch=0,
        grid=(num_t_tiles, num_v_tiles),                     # reduction (vocab) axis last
        in_specs=[
            _spec((tT, H), lambda t, v: (t, 0), n_buffers=1),   # ctx (const over vocab loop)
            _spec((tT, 1), lambda t, v: (t, 0), n_buffers=1),   # labels
            _spec((H, H), lambda t, v: (0, 0), n_buffers=1),    # dense W (bf16)
            _spec((1, H), lambda t, v: (0, 0), n_buffers=1),    # dense b
            _spec((1, H), lambda t, v: (0, 0), n_buffers=1),    # LN gamma
            _spec((1, H), lambda t, v: (0, 0), n_buffers=1),    # LN beta
            _spec((tV, H), lambda t, v: (v, 0)),                # tied embedding rows (streamed)
            _spec((1, tV), lambda t, v: (0, v)),                # decoder bias tile
        ],
        out_specs=pl.BlockSpec((1, 1, out_w), lambda t, v: (t, 0, 0)),
        scratch_shapes=[
            pltpu.VMEM((tT, H), jnp.bfloat16),               # transformed activations
            pltpu.VMEM((tT, 1), jnp.float32),                # running max
            pltpu.VMEM((tT, 1), jnp.float32),                # running sum(exp)
            pltpu.VMEM((tT, 1), jnp.float32),                # raw logit at label index
        ],
    )

    pred = pl.pallas_call(
        kernel,
        out_shape=jax.ShapeDtypeStruct((num_t_tiles, 1, out_w), jnp.float32),
        grid_spec=grid_spec,
        compiler_params=pltpu.CompilerParams(
            dimension_semantics=("parallel", "arbitrary"),
            vmem_limit_bytes=vmem_limit),
        cost_estimate=cost,
    )(
        ctx2d,
        labels2d,
        params["dense_w"].astype(jnp.bfloat16),
        params["dense_b"].reshape(1, H).astype(jnp.float32),
        params["ln_gamma"].reshape(1, H).astype(jnp.float32),
        params["ln_beta"].reshape(1, H).astype(jnp.float32),
        word_emb,
        dec_bias.reshape(1, V_pad),
    )
    # Slice the lane-padded slab back to real instances.
    return pred.reshape(num_t_tiles, out_w)[:, :insts_per_tile].reshape(n)


def lm_loss_jax(loglogits, labels, alpha, beta, gama):
    # Tiny (B, C) epilogue -> plain JAX (per perf review, second pallas_call dropped).
    # NOTE: `unselected` in the reference lm_loss is dead code and omitted.
    selected = jnp.sum(loglogits * labels, axis=-1)
    delta = beta * (1.0 - labels) + jnp.exp(loglogits)
    delta = -jnp.sum(jax.nn.log_softmax(gama * delta, axis=-1) * labels, axis=-1)
    return -selected + alpha * delta


def synthetic_bert_encoder(params, input_ids, token_type_ids, attention_mask):
    # TODO(synk): the real BERT transformer encoder is an *external* argument of forward();
    # stubbed here with a deterministic embedding + LayerNorm encoder (attention_mask unused).
    del attention_mask
    L = input_ids.shape[1]
    emb = params["word_emb"][input_ids]                      # (N, L, H)
    emb = emb + params["tok_type_emb"][token_type_ids]
    emb = emb + params["pos_emb"][None, :L, :]
    mu = emb.mean(-1, keepdims=True)
    var = ((emb - mu) ** 2).mean(-1, keepdims=True)
    return (emb - mu) / jnp.sqrt(var + 1e-12)


class LMMatcherPallas:
    def __init__(self, params, alpha=5.0, beta=0.1, gama=1.0, training=True):
        self.params = params
        self.alpha = float(alpha)
        self.beta = float(beta)
        self.gama = float(gama)
        self.training = training

    def __call__(self, input_ids, labels=None):
        # input_ids: (B, C, 5, L) int32, packed [ids, attention_mask, token_type, input_labels, unused]
        B, C = input_ids.shape[0], input_ids.shape[1]
        # TODO(synk): expanded-candidate path (C > 2: valid-instance gather + scatter back) not
        # implemented; this script uses C = 2 so is_expanded is False, matching the reference.
        flat = input_ids.reshape(-1, *input_ids.shape[2:])   # (N, 5, L)
        ids = flat[:, 0, :]
        attn_mask = flat[:, 1, :]
        tok_type = flat[:, 2, :]
        input_labels = flat[:, 3, :]

        ctx = synthetic_bert_encoder(self.params, ids, tok_type, attn_mask)   # (N, L, H)
        pred_logits = lm_prediction_head_and_score(ctx, input_labels, self.params)
        pred_logits = pred_logits.reshape(B, -1)             # (B, C)

        loss = jnp.zeros((1,), jnp.float32)
        if self.training:
            assert labels is not None
            loss = jnp.mean(lm_loss_jax(pred_logits, labels.reshape(B, -1),
                                        self.alpha, self.beta, self.gama))
        return jnp.exp(pred_logits), loss


def init_params(key, V, H, L):
    ks = jax.random.split(key, 4)
    return {
        "word_emb": 0.02 * jax.random.normal(ks[0], (V, H), jnp.float32),
        "tok_type_emb": 0.02 * jax.random.normal(ks[1], (2, H), jnp.float32),
        "pos_emb": 0.02 * jax.random.normal(ks[2], (L, H), jnp.float32),
        "dense_w": 0.02 * jax.random.normal(ks[3], (H, H), jnp.float32),
        "dense_b": jnp.zeros((H,), jnp.float32),
        "ln_gamma": jnp.ones((H,), jnp.float32),
        "ln_beta": jnp.zeros((H,), jnp.float32),
        "dec_bias": jnp.zeros((V,), jnp.float32),
    }


if __name__ == "__main__":
    B, C, L, H, V = 2, 2, 8, 32, 64   # batch, candidates, seq, hidden, vocab

    key = jax.random.PRNGKey(0)
    k_param, k_ids, k_lab, k_mask = jax.random.split(key, 4)
    params = init_params(k_param, V, H, L)

    ids = jax.random.randint(k_ids, (B, C, L), 1, V, dtype=jnp.int32)
    attn = jnp.ones((B, C, L), jnp.int32)
    tok_type = jnp.zeros((B, C, L), jnp.int32)
    lab_ids = jax.random.randint(k_lab, (B, C, L), 1, V, dtype=jnp.int32)
    mask_pos = jax.random.bernoulli(k_mask, 0.4, (B, C, L))
    mask_pos = mask_pos.at[:, :, 0].set(True)         # guarantee >=1 labeled token / instance
    input_labels = jnp.where(mask_pos, lab_ids, 0).astype(jnp.int32)

    packed = jnp.stack(
        [ids, attn, tok_type, input_labels, jnp.zeros_like(ids)], axis=2
    )                                                  # (B, C, 5, L)
    cand_labels = jnp.array([[1.0, 0.0], [0.0, 1.0]], jnp.float32)   # (B, C)

    matcher = LMMatcherPallas(params, alpha=5.0, beta=0.1, gama=1.0, training=True)
    probs, loss = matcher(packed, cand_labels)
    jax.block_until_ready((probs, loss))
    print("KERNEL_OK")
</pallas_src>

<mosaic_0001>
module attributes {stable_mosaic.version = 11 : i64} {
  func.func @kernel(%arg0: i32, %arg1: i32, %arg2: memref<32x32xbf16, #tpu.memory_space<vmem>>, %arg3: memref<32x1xi32, #tpu.memory_space<vmem>>, %arg4: memref<32x32xbf16, #tpu.memory_space<vmem>>, %arg5: memref<1x32xf32, #tpu.memory_space<vmem>>, %arg6: memref<1x32xf32, #tpu.memory_space<vmem>>, %arg7: memref<1x32xf32, #tpu.memory_space<vmem>>, %arg8: memref<128x32xbf16, #tpu.memory_space<vmem>>, %arg9: memref<1x128xf32, #tpu.memory_space<vmem>>, %arg10: memref<1x1x128xf32, #tpu.memory_space<vmem>>, %arg11: memref<32x32xbf16, #tpu.memory_space<vmem>>, %arg12: memref<32x1xf32, #tpu.memory_space<vmem>>, %arg13: memref<32x1xf32, #tpu.memory_space<vmem>>, %arg14: memref<32x1xf32, #tpu.memory_space<vmem>>) attributes {dimension_semantics = [#tpu.dimension_semantics<parallel>, #tpu.dimension_semantics<arbitrary>], iteration_bounds = array<i64: 1, 1>, scalar_prefetch = 0 : i64, scratch_operands = 4 : i64, tpu.core_type = #tpu.core_type<tc>, window_params = [{pipeline_mode = #tpu.pipeline_mode<synchronous>, transform_indices = @transform_0, window_bounds = array<i64: 32, 32>}, {pipeline_mode = #tpu.pipeline_mode<synchronous>, transform_indices = @transform_1, window_bounds = array<i64: 32, 1>}, {pipeline_mode = #tpu.pipeline_mode<synchronous>, transform_indices = @transform_2, window_bounds = array<i64: 32, 32>}, {pipeline_mode = #tpu.pipeline_mode<synchronous>, transform_indices = @transform_3, window_bounds = array<i64: 1, 32>}, {pipeline_mode = #tpu.pipeline_mode<synchronous>, transform_indices = @transform_4, window_bounds = array<i64: 1, 32>}, {pipeline_mode = #tpu.pipeline_mode<synchronous>, transform_indices = @transform_5, window_bounds = array<i64: 1, 32>}, {transform_indices = @transform_6, window_bounds = array<i64: 128, 32>}, {transform_indices = @transform_7, window_bounds = array<i64: 1, 128>}, {transform_indices = @transform_8, window_bounds = array<i64: 1, 1, 128>}]} {
    %c0_i32 = arith.constant 0 : i32
    %0 = arith.cmpi eq, %arg1, %c0_i32 : i32
    %1 = arith.extui %0 : i1 to i32
    %c0_i32_0 = arith.constant 0 : i32
    %2 = arith.cmpi ne, %1, %c0_i32_0 : i32
    scf.if %2 {
      %c0_26 = arith.constant 0 : index
      %c0_27 = arith.constant 0 : index
      %42 = vector.load %arg2[%c0_26, %c0_27] : memref<32x32xbf16, #tpu.memory_space<vmem>>, vector<32x32xbf16>
      %c0_28 = arith.constant 0 : index
      %c0_29 = arith.constant 0 : index
      %43 = vector.load %arg4[%c0_28, %c0_29] : memref<32x32xbf16, #tpu.memory_space<vmem>>, vector<32x32xbf16>
      %cst_30 = arith.constant dense<0.000000e+00> : vector<32x32xf32>
      %44 = tpu.matmul %42, %43, %cst_30 {dimension_numbers = #tpu.dot_dimension_numbers<[1], [0], [0], [1], [0, 0, 1, 1], [], []>} : vector<32x32xbf16>, vector<32x32xbf16>, vector<32x32xf32> -> vector<32x32xf32>
      %c0_31 = arith.constant 0 : index
      %c0_32 = arith.constant 0 : index
      %45 = vector.load %arg5[%c0_31, %c0_32] : memref<1x32xf32, #tpu.memory_space<vmem>>, vector<1x32xf32>
      %46 = vector.broadcast %45 : vector<1x32xf32> to vector<32x32xf32>
      %47 = arith.addf %44, %46 : vector<32x32xf32>
      %cst_33 = arith.constant 5.000000e-01 : f32
      %48 = vector.broadcast %cst_33 : f32 to vector<32x32xf32>
      %49 = arith.mulf %48, %47 : vector<32x32xf32>
      %cst_34 = arith.constant 0.707106769 : f32
      %50 = vector.broadcast %cst_34 : f32 to vector<32x32xf32>
      %51 = arith.mulf %47, %50 : vector<32x32xf32>
      %52 = math.erf %51 : vector<32x32xf32>
      %cst_35 = arith.constant 1.000000e+00 : f32
      %53 = vector.broadcast %cst_35 : f32 to vector<32x32xf32>
      %54 = arith.addf %53, %52 : vector<32x32xf32>
      %55 = arith.mulf %49, %54 : vector<32x32xf32>
      %cst_36 = arith.constant dense<0.000000e+00> : vector<32xf32>
      %56 = vector.multi_reduction <add>, %55, %cst_36 [1] : vector<32x32xf32> to vector<32xf32>
      %57 = vector.shape_cast %56 : vector<32xf32> to vector<32x1xf32>
      %cst_37 = arith.constant 3.200000e+01 : f32
      %58 = vector.broadcast %cst_37 : f32 to vector<32x1xf32>
      %59 = arith.divf %57, %58 : vector<32x1xf32>
      %60 = vector.broadcast %59 : vector<32x1xf32> to vector<32x32xf32>
      %61 = arith.subf %55, %60 : vector<32x32xf32>
      %62 = vector.broadcast %59 : vector<32x1xf32> to vector<32x32xf32>
      %63 = arith.subf %55, %62 : vector<32x32xf32>
      %64 = arith.mulf %61, %63 : vector<32x32xf32>
      %cst_38 = arith.constant dense<0.000000e+00> : vector<32xf32>
      %65 = vector.multi_reduction <add>, %64, %cst_38 [1] : vector<32x32xf32> to vector<32xf32>
      %66 = vector.shape_cast %65 : vector<32xf32> to vector<32x1xf32>
      %cst_39 = arith.constant 3.200000e+01 : f32
      %67 = vector.broadcast %cst_39 : f32 to vector<32x1xf32>
      %68 = arith.divf %66, %67 : vector<32x1xf32>
      %69 = vector.broadcast %59 : vector<32x1xf32> to vector<32x32xf32>
      %70 = arith.subf %55, %69 : vector<32x32xf32>
      %cst_40 = arith.constant 9.99999996E-13 : f32
      %71 = vector.broadcast %cst_40 : f32 to vector<32x1xf32>
      %72 = arith.addf %68, %71 : vector<32x1xf32>
      %73 = math.rsqrt %72 : vector<32x1xf32>
      %74 = vector.broadcast %73 : vector<32x1xf32> to vector<32x32xf32>
      %75 = arith.mulf %70, %74 : vector<32x32xf32>
      %c0_41 = arith.constant 0 : index
      %c0_42 = arith.constant 0 : index
      %76 = vector.load %arg6[%c0_41, %c0_42] : memref<1x32xf32, #tpu.memory_space<vmem>>, vector<1x32xf32>
      %77 = vector.broadcast %76 : vector<1x32xf32> to vector<32x32xf32>
      %78 = arith.mulf %75, %77 : vector<32x32xf32>
      %c0_43 = arith.constant 0 : index
      %c0_44 = arith.constant 0 : index
      %79 = vector.load %arg7[%c0_43, %c0_44] : memref<1x32xf32, #tpu.memory_space<vmem>>, vector<1x32xf32>
      %80 = vector.broadcast %79 : vector<1x32xf32> to vector<32x32xf32>
      %81 = arith.addf %78, %80 : vector<32x32xf32>
      %82 = arith.truncf %81 : vector<32x32xf32> to vector<32x32xbf16>
      %c0_45 = arith.constant 0 : index
      %c0_46 = arith.constant 0 : index
      %83 = vector.load %arg11[%c0_45, %c0_46] : memref<32x32xbf16, #tpu.memory_space<vmem>>, vector<32x32xbf16>
      tpu.vector_store %arg11[%c0_45, %c0_46], %82 {strides = array<i32>} : memref<32x32xbf16, #tpu.memory_space<vmem>>, vector<32x32xbf16>,
      %cst_47 = arith.constant 0xFF800000 : f32
      %84 = vector.broadcast %cst_47 : f32 to vector<32x1xf32>
      %c0_48 = arith.constant 0 : index
      %c0_49 = arith.constant 0 : index
      %85 = vector.load %arg12[%c0_48, %c0_49] : memref<32x1xf32, #tpu.memory_space<vmem>>, vector<32x1xf32>
      tpu.vector_store %arg12[%c0_48, %c0_49], %84 {strides = array<i32>} : memref<32x1xf32, #tpu.memory_space<vmem>>, vector<32x1xf32>,
      %cst_50 = arith.constant 0.000000e+00 : f32
      %86 = vector.broadcast %cst_50 : f32 to vector<32x1xf32>
      %c0_51 = arith.constant 0 : index
      %c0_52 = arith.constant 0 : index
      %87 = vector.load %arg13[%c0_51, %c0_52] : memref<32x1xf32, #tpu.memory_space<vmem>>, vector<32x1xf32>
      tpu.vector_store %arg13[%c0_51, %c0_52], %86 {strides = array<i32>} : memref<32x1xf32, #tpu.memory_space<vmem>>, vector<32x1xf32>,
      %cst_53 = arith.constant 0.000000e+00 : f32
      %88 = vector.broadcast %cst_53 : f32 to vector<32x1xf32>
      %c0_54 = arith.constant 0 : index
      %c0_55 = arith.constant 0 : index
      %89 = vector.load %arg14[%c0_54, %c0_55] : memref<32x1xf32, #tpu.memory_space<vmem>>, vector<32x1xf32>
      tpu.vector_store %arg14[%c0_54, %c0_55], %88 {strides = array<i32>} : memref<32x1xf32, #tpu.memory_space<vmem>>, vector<32x1xf32>,
    } else {
    }
    %c0 = arith.constant 0 : index
    %c0_1 = arith.constant 0 : index
    %3 = vector.load %arg11[%c0, %c0_1] : memref<32x32xbf16, #tpu.memory_space<vmem>>, vector<32x32xbf16>
    %c0_2 = arith.constant 0 : index
    %c0_3 = arith.constant 0 : index
    %4 = vector.load %arg8[%c0_2, %c0_3] : memref<128x32xbf16, #tpu.memory_space<vmem>>, vector<128x32xbf16>
    %cst = arith.constant dense<0.000000e+00> : vector<32x128xf32>
    %5 = tpu.matmul %3, %4, %cst {dimension_numbers = #tpu.dot_dimension_numbers<[1], [1], [0], [0], [0, 0, 1, 0], [], []>} : vector<32x32xbf16>, vector<128x32xbf16>, vector<32x128xf32> -> vector<32x128xf32>
    %c0_4 = arith.constant 0 : index
    %c0_5 = arith.constant 0 : index
    %6 = vector.load %arg9[%c0_4, %c0_5] : memref<1x128xf32, #tpu.memory_space<vmem>>, vector<1x128xf32>
    %7 = vector.broadcast %6 : vector<1x128xf32> to vector<32x128xf32>
    %8 = arith.addf %5, %7 : vector<32x128xf32>
    %c0_6 = arith.constant 0 : index
    %c0_7 = arith.constant 0 : index
    %9 = vector.load %arg3[%c0_6, %c0_7] : memref<32x1xi32, #tpu.memory_space<vmem>>, vector<32x1xi32>
    %c0_8 = arith.constant 0 : index
    %c0_9 = arith.constant 0 : index
    %10 = vector.load %arg12[%c0_8, %c0_9] : memref<32x1xf32, #tpu.memory_space<vmem>>, vector<32x1xf32>
    %cst_10 = arith.constant dense<0xFF800000> : vector<32xf32>
    %11 = vector.multi_reduction <maximumf>, %8, %cst_10 [1] : vector<32x128xf32> to vector<32xf32>
    %12 = vector.shape_cast %11 : vector<32xf32> to vector<32x1xf32>
    %13 = arith.maximumf %10, %12 : vector<32x1xf32>
    %c0_11 = arith.constant 0 : index
    %c0_12 = arith.constant 0 : index
    %14 = vector.load %arg13[%c0_11, %c0_12] : memref<32x1xf32, #tpu.memory_space<vmem>>, vector<32x1xf32>
    %15 = arith.subf %10, %13 : vector<32x1xf32>
    %16 = math.exp %15 : vector<32x1xf32>
    %17 = arith.mulf %14, %16 : vector<32x1xf32>
    %18 = vector.broadcast %13 : vector<32x1xf32> to vector<32x128xf32>
    %19 = arith.subf %8, %18 : vector<32x128xf32>
    %20 = math.exp %19 : vector<32x128xf32>
    %cst_13 = arith.constant dense<0.000000e+00> : vector<32xf32>
    %21 = vector.multi_reduction <add>, %20, %cst_13 [1] : vector<32x128xf32> to vector<32xf32>
    %22 = vector.shape_cast %21 : vector<32xf32> to vector<32x1xf32>
    %23 = arith.addf %17, %22 : vector<32x1xf32>
    %c0_14 = arith.constant 0 : index
    %c0_15 = arith.constant 0 : index
    %24 = vector.load %arg13[%c0_14, %c0_15] : memref<32x1xf32, #tpu.memory_space<vmem>>, vector<32x1xf32>
    tpu.vector_store %arg13[%c0_14, %c0_15], %23 {strides = array<i32>} : memref<32x1xf32, #tpu.memory_space<vmem>>, vector<32x1xf32>,
    %c0_16 = arith.constant 0 : index
    %c0_17 = arith.constant 0 : index
    %25 = vector.load %arg12[%c0_16, %c0_17] : memref<32x1xf32, #tpu.memory_space<vmem>>, vector<32x1xf32>
    tpu.vector_store %arg12[%c0_16, %c0_17], %13 {strides = array<i32>} : memref<32x1xf32, #tpu.memory_space<vmem>>, vector<32x1xf32>,
    %c128_i32 = arith.constant 128 : i32
    %26 = arith.muli %arg1, %c128_i32 : i32
    %27 = vector.broadcast %26 : i32 to vector<32x1xi32>
    %28 = arith.subi %9, %27 : vector<32x1xi32>
    %29 = tpu.iota {dimensions = array<i32: 1>} : vector<32x128xi32>
    %c0_18 = arith.constant 0 : index
    %c0_19 = arith.constant 0 : index
    %30 = vector.load %arg14[%c0_18, %c0_19] : memref<32x1xf32, #tpu.memory_space<vmem>>, vector<32x1xf32>
    %31 = vector.broadcast %28 : vector<32x1xi32> to vector<32x128xi32>
    %32 = arith.cmpi eq, %29, %31 : vector<32x128xi32>
    %cst_20 = arith.constant 0.000000e+00 : f32
    %33 = vector.broadcast %cst_20 : f32 to vector<32x128xf32>
    %34 = arith.select %32, %8, %33 : vector<32x128xi1>, vector<32x128xf32>
    %cst_21 = arith.constant dense<0.000000e+00> : vector<32xf32>
    %35 = vector.multi_reduction <add>, %34, %cst_21 [1] : vector<32x128xf32> to vector<32xf32>
    %36 = vector.shape_cast %35 : vector<32xf32> to vector<32x1xf32>
    %37 = arith.addf %30, %36 : vector<32x1xf32>
    %c0_22 = arith.constant 0 : index
    %c0_23 = arith.constant 0 : index
    %38 = vector.load %arg14[%c0_22, %c0_23] : memref<32x1xf32, #tpu.memory_space<vmem>>, vector<32x1xf32>
    tpu.vector_store %arg14[%c0_22, %c0_23], %37 {strides = array<i32>} : memref<32x1xf32, #tpu.memory_space<vmem>>, vector<32x1xf32>,
    %c0_i32_24 = arith.constant 0 : i32
    %39 = arith.cmpi eq, %arg1, %c0_i32_24 : i32
    %40 = arith.extui %39 : i1 to i32
    %c0_i32_25 = arith.constant 0 : i32
    %41 = arith.cmpi ne, %40, %c0_i32_25 : i32
    scf.if %41 {
      %c0_26 = arith.constant 0 : index
      %c0_27 = arith.constant 0 : index
      %42 = vector.load %arg12[%c0_26, %c0_27] : memref<32x1xf32, #tpu.memory_space<vmem>>, vector<32x1xf32>
      %c0_28 = arith.constant 0 : index
      %c0_29 = arith.constant 0 : index
      %43 = vector.load %arg13[%c0_28, %c0_29] : memref<32x1xf32, #tpu.memory_space<vmem>>, vector<32x1xf32>
      %44 = math.log %43 : vector<32x1xf32>
      %45 = arith.addf %42, %44 : vector<32x1xf32>
      %c0_30 = arith.constant 0 : index
      %c0_31 = arith.constant 0 : index
      %46 = vector.load %arg14[%c0_30, %c0_31] : memref<32x1xf32, #tpu.memory_space<vmem>>, vector<32x1xf32>
      %47 = arith.subf %46, %45 : vector<32x1xf32>
      %c0_i32_32 = arith.constant 0 : i32
      %48 = vector.broadcast %c0_i32_32 : i32 to vector<32x1xi32>
      %49 = arith.cmpi ne, %9, %48 : vector<32x1xi32>
      %50 = arith.extui %49 : vector<32x1xi1> to vector<32x1xi32>
      %51 = arith.sitofp %50 : vector<32x1xi32> to vector<32x1xf32>
      %52 = arith.mulf %47, %51 : vector<32x1xf32>
      %53 = tpu.iota {dimensions = array<i32: 0>} : vector<32x128xi32>
      %54 = tpu.iota {dimensions = array<i32: 1>} : vector<32x128xi32>
      %c8_i32 = arith.constant 8 : i32
      %55 = vector.broadcast %c8_i32 : i32 to vector<32x128xi32>
      %56 = arith.muli %54, %55 : vector<32x128xi32>
      %57 = arith.cmpi sge, %53, %56 : vector<32x128xi32>
      %c1_i32 = arith.constant 1 : i32
      %58 = vector.broadcast %c1_i32 : i32 to vector<32x128xi32>
      %59 = arith.addi %54, %58 : vector<32x128xi32>
      %c8_i32_33 = arith.constant 8 : i32
      %60 = vector.broadcast %c8_i32_33 : i32 to vector<32x128xi32>
      %61 = arith.muli %59, %60 : vector<32x128xi32>
      %62 = arith.cmpi slt, %53, %61 : vector<32x128xi32>
      %63 = arith.andi %57, %62 : vector<32x128xi1>
      %cst_34 = arith.constant 0.000000e+00 : f32
      %64 = vector.shape_cast %52 : vector<32x1xf32> to vector<32x1xf32>
      %65 = vector.broadcast %64 : vector<32x1xf32> to vector<32x128xf32>
      %66 = vector.broadcast %cst_34 : f32 to vector<32x128xf32>
      %67 = arith.select %63, %65, %66 : vector<32x128xi1>, vector<32x128xf32>
      %cst_35 = arith.constant dense<0.000000e+00> : vector<128xf32>
      %68 = vector.multi_reduction <add>, %67, %cst_35 [0] : vector<32x128xf32> to vector<128xf32>
      %69 = vector.shape_cast %68 : vector<128xf32> to vector<1x128xf32>
      %cst_36 = arith.constant 0.000000e+00 : f32
      %70 = vector.shape_cast %51 : vector<32x1xf32> to vector<32x1xf32>
      %71 = vector.broadcast %70 : vector<32x1xf32> to vector<32x128xf32>
      %72 = vector.broadcast %cst_36 : f32 to vector<32x128xf32>
      %73 = arith.select %63, %71, %72 : vector<32x128xi1>, vector<32x128xf32>
      %cst_37 = arith.constant dense<0.000000e+00> : vector<128xf32>
      %74 = vector.multi_reduction <add>, %73, %cst_37 [0] : vector<32x128xf32> to vector<128xf32>
      %75 = vector.shape_cast %74 : vector<128xf32> to vector<1x128xf32>
      %76 = tpu.iota {dimensions = array<i32: 1>} : vector<1x128xi32>
      %c4_i32 = arith.constant 4 : i32
      %77 = vector.broadcast %c4_i32 : i32 to vector<1x128xi32>
      %78 = arith.cmpi slt, %76, %77 : vector<1x128xi32>
      %cst_38 = arith.constant 1.000000e+00 : f32
      %79 = vector.broadcast %cst_38 : f32 to vector<1x128xf32>
      %80 = arith.select %78, %75, %79 : vector<1x128xi1>, vector<1x128xf32>
      %81 = arith.divf %69, %80 : vector<1x128xf32>
      %82 = vector.shape_cast %81 : vector<1x128xf32> to vector<1x1x128xf32>
      %c0_39 = arith.constant 0 : index
      %c0_40 = arith.constant 0 : index
      %c0_41 = arith.constant 0 : index
      %83 = vector.load %arg10[%c0_39, %c0_40, %c0_41] : memref<1x1x128xf32, #tpu.memory_space<vmem>>, vector<1x1x128xf32>
      tpu.vector_store %arg10[%c0_39, %c0_40, %c0_41], %82 {strides = array<i32>} : memref<1x1x128xf32, #tpu.memory_space<vmem>>, vector<1x1x128xf32>,
    } else {
    }
    return
  }
  func.func @transform_0(%arg0: i32, %arg1: i32) -> (i32, i32) {
    %c0_i32 = arith.constant 0 : i32
    %c0_i32_0 = arith.constant 0 : i32
    return %arg0, %c0_i32 : i32, i32
  }
  func.func @transform_1(%arg0: i32, %arg1: i32) -> (i32, i32) {
    %c0_i32 = arith.constant 0 : i32
    %c0_i32_0 = arith.constant 0 : i32
    return %arg0, %c0_i32 : i32, i32
  }
  func.func @transform_2(%arg0: i32, %arg1: i32) -> (i32, i32) {
    %c0_i32 = arith.constant 0 : i32
    %c0_i32_0 = arith.constant 0 : i32
    %c0_i32_1 = arith.constant 0 : i32
    return %c0_i32, %c0_i32_0 : i32, i32
  }
  func.func @transform_3(%arg0: i32, %arg1: i32) -> (i32, i32) {
    %c0_i32 = arith.constant 0 : i32
    %c0_i32_0 = arith.constant 0 : i32
    %c0_i32_1 = arith.constant 0 : i32
    return %c0_i32, %c0_i32_0 : i32, i32
  }
  func.func @transform_4(%arg0: i32, %arg1: i32) -> (i32, i32) {
    %c0_i32 = arith.constant 0 : i32
    %c0_i32_0 = arith.constant 0 : i32
    %c0_i32_1 = arith.constant 0 : i32
    return %c0_i32, %c0_i32_0 : i32, i32
  }
  func.func @transform_5(%arg0: i32, %arg1: i32) -> (i32, i32) {
    %c0_i32 = arith.constant 0 : i32
    %c0_i32_0 = arith.constant 0 : i32
    %c0_i32_1 = arith.constant 0 : i32
    return %c0_i32, %c0_i32_0 : i32, i32
  }
  func.func @transform_6(%arg0: i32, %arg1: i32) -> (i32, i32) {
    %c0_i32 = arith.constant 0 : i32
    %c0_i32_0 = arith.constant 0 : i32
    return %arg1, %c0_i32 : i32, i32
  }
  func.func @transform_7(%arg0: i32, %arg1: i32) -> (i32, i32) {
    %c0_i32 = arith.constant 0 : i32
    %c0_i32_0 = arith.constant 0 : i32
    return %c0_i32, %arg1 : i32, i32
  }
  func.func @transform_8(%arg0: i32, %arg1: i32) -> (i32, i32, i32) {
    %c0_i32 = arith.constant 0 : i32
    %c0_i32_0 = arith.constant 0 : i32
    %c0_i32_1 = arith.constant 0 : i32
    return %arg0, %c0_i32, %c0_i32_0 : i32, i32, i32
  }
}

</mosaic_0001>

<llo_original>
// kernel: tpu_custom_call.1
$region0: #{tpu_custom_call.1}
  #allocation0 [shape = 'u32[]', space=smem, size = 0x4, offset = 0x4, fixed_abs, tag = 'smem constant byte address 0x4 - core index']
  #allocation1 [shape = 'u32[144,128]{1,0:T(1,128)}', space=vmem, size = 0x12000, scoped, tag = 'internal scratch']
  #allocation2 [shape = 'bf16[32,32]{1,0:T(16,128)(2,1)}', space=vmem, size = 0x2000, scoped, tag = 'scratch operand']
  #allocation3 [shape = 'f32[32,1]{1,0:T(8,128)}', space=vmem, size = 0x4000, scoped, tag = 'scratch operand']
  #allocation4 [shape = 'f32[32,1]{1,0:T(8,128)}', space=vmem, size = 0x4000, scoped, tag = 'scratch operand']
  #allocation5 [shape = 'f32[32,1]{1,0:T(8,128)}', space=vmem, size = 0x4000, scoped, tag = 'scratch operand']
  %s0 = inlined_call_operand.vmem [shape: bf16[32,32], index: 0, kind: input, shape index: {}]
  %s1 = inlined_call_operand.vmem [shape: s32[32,1], index: 1, kind: input, shape index: {}]
  %s2 = inlined_call_operand.vmem [shape: bf16[32,32], index: 2, kind: input, shape index: {}]
  %s3 = inlined_call_operand.vmem [shape: f32[1,32], index: 3, kind: input, shape index: {}]
  %s4 = inlined_call_operand.vmem [shape: f32[1,32], index: 4, kind: input, shape index: {}]
  %s5 = inlined_call_operand.vmem [shape: f32[1,32], index: 5, kind: input, shape index: {}]
  %s6 = inlined_call_operand.vmem [shape: bf16[128,32], index: 6, kind: input, shape index: {}]
  %s7 = inlined_call_operand.vmem [shape: f32[1,128], index: 7, kind: input, shape index: {}]
  %s8 = inlined_call_operand.hbm [shape: f32[1,1,128], index: 8, kind: output, shape index: {}]
  %s9 = sld [smem:[#allocation0]]
  $region50: #{tpu_custom_call.1} parent=0
    _
  %s11 = ssub.s32 1, %s9
  %s12 = scalar_select 0, %s11, %s9
  $region1: #{tpu_custom_call.1} parent=0
    #allocation6 [shape = 'u8[512]{0}', space=vmem, size = 0x400, scoped, tag = 'output window, operand 0, single buffered']
    #allocation7 [shape = 's32[1]{0}', space=sflag, size = 0x4, scoped, tag = 'scoped memory for tpu_custom_call.1']
    %13 = vsyncpa [#allocation7], 0
    // Predicated region
    $region2: #{tpu_custom_call.1} parent=1 // pred_check
      _
    $region3: #{tpu_custom_call.1} parent=1 // pred_check_branch
      %15 = sbr.rel (0) target = $region5
    $region4: #{tpu_custom_call.1} parent=1 // pred_region
      _
    $region5: #{tpu_custom_call.1} parent=1 // pred_fallthru
      _
    // Predicated region
    $region6: #{tpu_custom_call.1} parent=1 // pred_check
      _
    $region7: #{tpu_custom_call.1} parent=1 // pred_check_branch
      %17 = sbr.rel (0) target = $region9
    $region8: #{tpu_custom_call.1} parent=1 // pred_region
      _
    $region9: #{tpu_custom_call.1} parent=1 // pred_fallthru
      _
    // Predicated region
    $region10: #{tpu_custom_call.1} parent=1 // pred_check
      _
    $region11: #{tpu_custom_call.1} parent=1 // pred_check_branch
      %19 = sbr.rel (0) target = $region13
    $region12: #{tpu_custom_call.1} parent=1 // pred_region
      _
    $region13: #{tpu_custom_call.1} parent=1 // pred_fallthru
      _
    // Predicated region
    $region14: #{tpu_custom_call.1} parent=1 // pred_check
      _
    $region15: #{tpu_custom_call.1} parent=1 // pred_check_branch
      %21 = sbr.rel (0) target = $region17
    $region16: #{tpu_custom_call.1} parent=1 // pred_region
      _
    $region17: #{tpu_custom_call.1} parent=1 // pred_fallthru
      _
    // Predicated region
    $region18: #{tpu_custom_call.1} parent=1 // pred_check
      _
    $region19: #{tpu_custom_call.1} parent=1 // pred_check_branch
      %23 = sbr.rel (0) target = $region21
    $region20: #{tpu_custom_call.1} parent=1 // pred_region
      _
    $region21: #{tpu_custom_call.1} parent=1 // pred_fallthru
      _
    // Predicated region
    $region22: #{tpu_custom_call.1} parent=1 // pred_check
      _
    $region23: #{tpu_custom_call.1} parent=1 // pred_check_branch
      %25 = sbr.rel (0) target = $region25
    $region24: #{tpu_custom_call.1} parent=1 // pred_region
      _
    $region25: #{tpu_custom_call.1} parent=1 // pred_fallthru
      _
    // Predicated region
    $region26: #{tpu_custom_call.1} parent=1 // pred_check
      _
    $region27: #{tpu_custom_call.1} parent=1 // pred_check_branch
      %27 = sbr.rel (0) target = $region29
    $region28: #{tpu_custom_call.1} parent=1 // pred_region
      _
    $region29: #{tpu_custom_call.1} parent=1 // pred_fallthru
      _
    // Predicated region
    $region30: #{tpu_custom_call.1} parent=1 // pred_check
      _
    $region31: #{tpu_custom_call.1} parent=1 // pred_check_branch
      %29 = sbr.rel (0) target = $region33
    $region32: #{tpu_custom_call.1} parent=1 // pred_region
      _
    $region33: #{tpu_custom_call.1} parent=1 // pred_fallthru
      _
    %p31 = scmp.eq.s32.totalorder 0, 0
    // Predicated region
    $region34: #{tpu_custom_call.1} parent=1 // pred_check
      %p32 = pneg %p31
    $region35: #{tpu_custom_call.1} parent=1 // pred_check_branch
      %34 = sbr.rel (%p32) target = $region37
    $region36: #{tpu_custom_call.1} parent=1 // pred_region
      %v35 = vld [vmem:[%s0] sm:$0xf]
      %v36 = vld [vmem:[%s0 + $0x4] sm:$0xf]
      %v37 = vld [vmem:[%s0 + $0x8] sm:$0xf]
      %v38 = vld [vmem:[%s0 + $0xc] sm:$0xf]
      %v39 = vld [vmem:[%s2] sm:$0xf]
      %v40 = vld [vmem:[%s2 + $0x4] sm:$0xf]
      %v41 = vld [vmem:[%s2 + $0x8] sm:$0xf]
      %v42 = vld [vmem:[%s2 + $0xc] sm:$0xf]
      %v43 = vld [vmem:[%s3] sm:$0x1]
      %v45 = vlaneseq
      %v46 = vshrl.u32 %v45, 7
      %v47 = vsub.s32 0, %v46
      %v48 = vrot.slane %v43, %v47
      %v54 = vunpack.c.l.b16 %v35
      %v55 = vunpack.c.l.b16 %v36
      %v56 = vunpack.c.l.b16 %v37
      %v57 = vunpack.c.l.b16 %v38
      %v58 = vpack.c.b16 %v55, %v54
      %v59 = vpack.c.b16 %v57, %v56
      %v64 = vunpack.c.l.b16 %v39
      %v65 = vunpack.c.l.b16 %v40
      %v66 = vunpack.c.l.b16 %v41
      %v67 = vunpack.c.l.b16 %v42
      %v68 = vpack.c.b16 %v65, %v64
      %v69 = vpack.c.b16 %v67, %v66
      %vm72 = vcmask 261120
      %v74 = vsel %vm72, %v58, 0
      %v77 = vsel %vm72, %v59, 0
      %79 = vmatprep.subr.bf16.mxu0 0
      %80 = vmatpush1.bf16.msra.mxu0 %v68
      %81 = vmatprep.subr.bf16.mxu0 0
      %82 = vmatpush1.bf16.msra.mxu0 %v69
      %83 = vmatprep.subr.bf16.mxu0 0
      %84 = vmatpush1.bf16.msra.mxu0 0
      %85 = vmatprep.subr.bf16.mxu0 0
      %86 = vmatpush1.bf16.msra.mxu0 0
      %87 = vmatprep.subr.bf16.mxu0 0
      %88 = vmatpush1.bf16.msra.mxu0 0
      %89 = vmatprep.subr.bf16.mxu0 0
      %90 = vmatpush1.bf16.msra.mxu0 0
      %91 = vmatprep.subr.bf16.mxu0 0
      %92 = vmatpush1.bf16.msra.mxu0 0
      %93 = vmatprep.subr.bf16.mxu0 0
      %94 = vmatpush1.bf16.msra.mxu0 0
      %95 = vmatprep.subr.bf16.mxu0 0
      %96 = vmatpush1.bf16.msra.mxu0 0
      %97 = vmatprep.subr.bf16.mxu0 0
      %98 = vmatpush1.bf16.msra.mxu0 0
      %99 = vmatprep.subr.bf16.mxu0 0
      %100 = vmatpush1.bf16.msra.mxu0 0
      %101 = vmatprep.subr.bf16.mxu0 0
      %102 = vmatpush1.bf16.msra.mxu0 0
      %103 = vmatprep.subr.bf16.mxu0 0
      %104 = vmatpush1.bf16.msra.mxu0 0
      %105 = vmatprep.subr.bf16.mxu0 0
      %106 = vmatpush1.bf16.msra.mxu0 0
      %107 = vmatprep.subr.bf16.mxu0 0
      %108 = vmatpush1.bf16.msra.mxu0 0
      %109 = vmatprep.subr.bf16.mxu0 0
      %110 = vmatpush1.bf16.msra.mxu0 0
      %111 = vmatprep.mubr.bf16.mxu0 0
      %112 = vmatmul.mubr.bf16.gmra.mrb[0].mxu0 %v74
      %v113 = vpop.f32.mrb[0].mxu0
      %v114 = vadd.f32 %v48, %v113
      %v115 = vpop.f32.mrb[0].mxu0
      %v116 = vpop.f32.mrb[0].mxu0
      %v117 = vadd.f32 %v48, %v116
      %v118 = vpop.f32.mrb[0].mxu0
      %119 = vmatprep.mubr.bf16.mxu0 0
      %120 = vmatmul.mubr.bf16.gmra.mrb[0].mxu0 %v77
      %v121 = vpop.f32.mrb[0].mxu0
      %v122 = vadd.f32 %v48, %v121
      %v123 = vpop.f32.mrb[0].mxu0
      %v124 = vpop.f32.mrb[0].mxu0
      %v125 = vadd.f32 %v48, %v124
      %v126 = vpop.f32.mrb[0].mxu0
      %127 = vdwg.mxu0
      %v128 = vmul.f32 %v114, 0.5
      %v129 = vmul.f32 %v117, 0.5
      %v130 = vmul.f32 %v122, 0.5
      %v131 = vmul.f32 %v125, 0.5
      %v132 = vmul.f32 %v114, 0.70710677
      %v133 = vmul.f32 %v117, 0.70710677
      %v134 = vmul.f32 %v122, 0.70710677
      %v135 = vmul.f32 %v125, 0.70710677
      %v136 = verf.f32.pop %v132
      %v137 = verf.f32.pop %v133
      %v138 = verf.f32.pop %v134
      %v139 = verf.f32.pop %v135
      %v140 = vadd.f32 %v136, 1.0
      %v141 = vadd.f32 %v137, 1.0
      %v142 = vadd.f32 %v138, 1.0
      %v143 = vadd.f32 %v139, 1.0
      %v144 = vmul.f32 %v128, %v140
      %v145 = vmul.f32 %v129, %v141
      %v146 = vmul.f32 %v130, %v142
      %v147 = vmul.f32 %v131, %v143
      %v148 = vsel %vm72, %v144, 0.0
      %149 = vadd.xlane.f32.xlu0 %v148
      %v150 = vpop.xlane.xlu0 %149
      %v151 = vsel %vm72, %v145, 0.0
      %152 = vadd.xlane.f32.xlu0 %v151
      %v153 = vpop.xlane.xlu0 %152
      %v154 = vsel %vm72, %v146, 0.0
      %155 = vadd.xlane.f32.xlu0 %v154
      %v156 = vpop.xlane.xlu0 %155
      %v157 = vsel %vm72, %v147, 0.0
      %158 = vadd.xlane.f32.xlu0 %v157
      %v159 = vpop.xlane.xlu0 %158
      %v160 = vrcp.pop 32.0
      %v161 = vmul.f32 %v150, %v160
      %v162 = vmul.f32 %v153, %v160
      %v163 = vmul.f32 %v156, %v160
      %v164 = vmul.f32 %v159, %v160
      %v165 = vsub.f32 %v144, %v161
      %v166 = vsub.f32 %v145, %v162
      %v167 = vsub.f32 %v146, %v163
      %v168 = vsub.f32 %v147, %v164
      %v169 = vmul.f32 %v165, %v165
      %v170 = vmul.f32 %v166, %v166
      %v171 = vmul.f32 %v167, %v167
      %v172 = vmul.f32 %v168, %v168
      %v173 = vsel %vm72, %v169, 0.0
      %174 = vadd.xlane.f32.xlu0 %v173
      %v175 = vpop.xlane.xlu0 %174
      %v176 = vsel %vm72, %v170, 0.0
      %177 = vadd.xlane.f32.xlu0 %v176
      %v178 = vpop.xlane.xlu0 %177
      %v179 = vsel %vm72, %v171, 0.0
      %180 = vadd.xlane.f32.xlu0 %v179
      %v181 = vpop.xlane.xlu0 %180
      %v182 = vsel %vm72, %v172, 0.0
      %183 = vadd.xlane.f32.xlu0 %v182
      %v184 = vpop.xlane.xlu0 %183
      %v185 = vmul.f32 %v175, %v160
      %v186 = vmul.f32 %v178, %v160
      %v187 = vmul.f32 %v181, %v160
      %v188 = vmul.f32 %v184, %v160
      %v189 = vadd.f32 %v185, 1e-12
      %v190 = vadd.f32 %v186, 1e-12
      %v191 = vadd.f32 %v187, 1e-12
      %v192 = vadd.f32 %v188, 1e-12
      %v193 = vrsqrt.pop %v189
      %v194 = vrsqrt.pop %v190
      %v195 = vrsqrt.pop %v191
      %v196 = vrsqrt.pop %v192
      %v197 = vmul.f32 %v165, %v193
      %v198 = vmul.f32 %v166, %v194
      %v199 = vmul.f32 %v167, %v195
      %v200 = vmul.f32 %v168, %v196
      %v201 = vld [vmem:[%s4] sm:$0x1]
      %v203 = vlaneseq
      %v204 = vshrl.u32 %v203, 7
      %v205 = vsub.s32 0, %v204
      %v206 = vrot.slane %v201, %v205
      %v208 = vmul.f32 %v197, %v206
      %v209 = vmul.f32 %v198, %v206
      %v210 = vmul.f32 %v199, %v206
      %v211 = vmul.f32 %v200, %v206
      %v212 = vld [vmem:[%s5] sm:$0x1]
      %v214 = vlaneseq
      %v215 = vshrl.u32 %v214, 7
      %v216 = vsub.s32 0, %v215
      %v217 = vrot.slane %v212, %v216
      %v219 = vadd.f32 %v208, %v217
      %v220 = vadd.f32 %v209, %v217
      %v221 = vadd.f32 %v210, %v217
      %v222 = vadd.f32 %v211, %v217
      %v223 = vpack.c.bf16 %v220, %v219
      %v224 = vpack.c.bf16 %v222, %v221
      %225 = vst.msk [vmem:[#allocation2] sm:$0xff] %vm72, %v223
      %226 = vst.msk [vmem:[#allocation2 + $0x8] sm:$0xff] %vm72, %v224
      %vm227 = vcmask 7168
      %228 = vst.msk [vmem:[#allocation3] sm:$0xff] %vm227, -inf
      %229 = vst.msk [vmem:[#allocation3 + $0x8] sm:$0xff] %vm227, -inf
      %230 = vst.msk [vmem:[#allocation3 + $0x10] sm:$0xff] %vm227, -inf
      %231 = vst.msk [vmem:[#allocation3 + $0x18] sm:$0xff] %vm227, -inf
      %232 = vst.msk [vmem:[#allocation4] sm:$0xff] %vm227, 0.0
      %233 = vst.msk [vmem:[#allocation4 + $0x8] sm:$0xff] %vm227, 0.0
      %234 = vst.msk [vmem:[#allocation4 + $0x10] sm:$0xff] %vm227, 0.0
      %235 = vst.msk [vmem:[#allocation4 + $0x18] sm:$0xff] %vm227, 0.0
      %236 = vst.msk [vmem:[#allocation5] sm:$0xff] %vm227, 0.0
      %237 = vst.msk [vmem:[#allocation5 + $0x8] sm:$0xff] %vm227, 0.0
      %238 = vst.msk [vmem:[#allocation5 + $0x10] sm:$0xff] %vm227, 0.0
      %239 = vst.msk [vmem:[#allocation5 + $0x18] sm:$0xff] %vm227, 0.0
    $region37: #{tpu_custom_call.1} parent=1 // pred_fallthru
      _
    %v240 = vld [vmem:[#allocation2] sm:$0xff]
    %v241 = vld [vmem:[#allocation2 + $0x8] sm:$0xff]
    %v242 = vld [vmem:[%s6] sm:$0xf]
    %v243 = vld [vmem:[%s6 + $0x4] sm:$0xf]
    %v244 = vld [vmem:[%s6 + $0x8] sm:$0xf]
    %v245 = vld [vmem:[%s6 + $0xc] sm:$0xf]
    %v246 = vld [vmem:[%s6 + $0x10] sm:$0xf]
    %v247 = vld [vmem:[%s6 + $0x14] sm:$0xf]
    %v248 = vld [vmem:[%s6 + $0x18] sm:$0xf]
    %v249 = vld [vmem:[%s6 + $0x1c] sm:$0xf]
    %v250 = vld [vmem:[%s6 + $0x20] sm:$0xf]
    %v251 = vld [vmem:[%s6 + $0x24] sm:$0xf]
    %v252 = vld [vmem:[%s6 + $0x28] sm:$0xf]
    %v253 = vld [vmem:[%s6 + $0x2c] sm:$0xf]
    %v254 = vld [vmem:[%s6 + $0x30] sm:$0xf]
    %v255 = vld [vmem:[%s6 + $0x34] sm:$0xf]
    %v256 = vld [vmem:[%s6 + $0x38] sm:$0xf]
    %v257 = vld [vmem:[%s6 + $0x3c] sm:$0xf]
    %v258 = vld [vmem:[%s7] sm:$0x1]
    %v260 = vlaneseq
    %v261 = vshrl.u32 %v260, 7
    %v262 = vsub.s32 0, %v261
    %v263 = vrot.slane %v258, %v262
    %v281 = vunpack.c.l.b16 %v242
    %v282 = vunpack.c.l.b16 %v243
    %v283 = vunpack.c.l.b16 %v244
    %v284 = vunpack.c.l.b16 %v245
    %v285 = vunpack.c.l.b16 %v246
    %v286 = vunpack.c.l.b16 %v247
    %v287 = vunpack.c.l.b16 %v248
    %v288 = vunpack.c.l.b16 %v249
    %v289 = vunpack.c.l.b16 %v250
    %v290 = vunpack.c.l.b16 %v251
    %v291 = vunpack.c.l.b16 %v252
    %v292 = vunpack.c.l.b16 %v253
    %v293 = vunpack.c.l.b16 %v254
    %v294 = vunpack.c.l.b16 %v255
    %v295 = vunpack.c.l.b16 %v256
    %v296 = vunpack.c.l.b16 %v257
    %v297 = vpack.c.b16 %v282, %v281
    %v298 = vpack.c.b16 %v284, %v283
    %v299 = vpack.c.b16 %v286, %v285
    %v300 = vpack.c.b16 %v288, %v287
    %v301 = vpack.c.b16 %v290, %v289
    %v302 = vpack.c.b16 %v292, %v291
    %v303 = vpack.c.b16 %v294, %v293
    %v304 = vpack.c.b16 %v296, %v295
    %vm305 = vcmask 261120
    %v307 = vsel %vm305, %v240, 0
    %v310 = vsel %vm305, %v241, 0
    %v313 = vsel %vm305, %v297, 0
    %v316 = vsel %vm305, %v298, 0
    %v319 = vsel %vm305, %v299, 0
    %v322 = vsel %vm305, %v300, 0
    %v325 = vsel %vm305, %v301, 0
    %v328 = vsel %vm305, %v302, 0
    %v331 = vsel %vm305, %v303, 0
    %v334 = vsel %vm305, %v304, 0
    %336 = vmatprep.subr.bf16.mxu0 0
    %337 = vmatpush1.bf16.xpose.msra.mxu0 %v313
    %338 = vmatprep.subr.bf16.mxu0 0
    %339 = vmatpush1.bf16.xpose.msra.mxu0 %v316
    %340 = vmatprep.subr.bf16.mxu0 0
    %341 = vmatpush1.bf16.xpose.msra.mxu0 %v319
    %342 = vmatprep.subr.bf16.mxu0 0
    %343 = vmatpush1.bf16.xpose.msra.mxu0 %v322
    %344 = vmatprep.subr.bf16.mxu0 0
    %345 = vmatpush1.bf16.xpose.msra.mxu0 %v325
    %346 = vmatprep.subr.bf16.mxu0 0
    %347 = vmatpush1.bf16.xpose.msra.mxu0 %v328
    %348 = vmatprep.subr.bf16.mxu0 0
    %349 = vmatpush1.bf16.xpose.msra.mxu0 %v331
    %350 = vmatprep.subr.bf16.mxu0 0
    %351 = vmatpush1.bf16.xpose.msra.mxu0 %v334
    %352 = vmatprep.subr.bf16.mxu0 0
    %353 = vmatpush1.bf16.xpose.msra.mxu0 0
    %354 = vmatprep.subr.bf16.mxu0 0
    %355 = vmatpush1.bf16.xpose.msra.mxu0 0
    %356 = vmatprep.subr.bf16.mxu0 0
    %357 = vmatpush1.bf16.xpose.msra.mxu0 0
    %358 = vmatprep.subr.bf16.mxu0 0
    %359 = vmatpush1.bf16.xpose.msra.mxu0 0
    %360 = vmatprep.subr.bf16.mxu0 0
    %361 = vmatpush1.bf16.xpose.msra.mxu0 0
    %362 = vmatprep.subr.bf16.mxu0 0
    %363 = vmatpush1.bf16.xpose.msra.mxu0 0
    %364 = vmatprep.subr.bf16.mxu0 0
    %365 = vmatpush1.bf16.xpose.msra.mxu0 0
    %366 = vmatprep.subr.bf16.mxu0 0
    %367 = vmatpush1.bf16.xpose.msra.mxu0 0
    %368 = vmatprep.mubr.bf16.mxu0 0
    %369 = vmatmul.mubr.bf16.gmra.mrb[0].mxu0 %v307
    %v370 = vpop.f32.mrb[0].mxu0
    %v371 = vadd.f32 %v263, %v370
    %v372 = vpop.f32.mrb[0].mxu0
    %v373 = vpop.f32.mrb[0].mxu0
    %v374 = vadd.f32 %v263, %v373
    %v375 = vpop.f32.mrb[0].mxu0
    %376 = vmatprep.mubr.bf16.mxu0 0
    %377 = vmatmul.mubr.bf16.gmra.mrb[0].mxu0 %v310
    %v378 = vpop.f32.mrb[0].mxu0
    %v379 = vadd.f32 %v263, %v378
    %v380 = vpop.f32.mrb[0].mxu0
    %v381 = vpop.f32.mrb[0].mxu0
    %v382 = vadd.f32 %v263, %v381
    %v383 = vpop.f32.mrb[0].mxu0
    %384 = vdwg.mxu0
    %v385 = vld [vmem:[%s1] sm:$0xff]
    %v386 = vld [vmem:[%s1 + $0x8] sm:$0xff]
    %v387 = vld [vmem:[%s1 + $0x10] sm:$0xff]
    %v388 = vld [vmem:[%s1 + $0x18] sm:$0xff]
    %v389 = vld [vmem:[#allocation3] sm:$0xff]
    %v390 = vld [vmem:[#allocation3 + $0x8] sm:$0xff]
    %v391 = vld [vmem:[#allocation3 + $0x10] sm:$0xff]
    %v392 = vld [vmem:[#allocation3 + $0x18] sm:$0xff]
    %393 = vmax.xlane.f32.xlu0 %v371
    %v394 = vpop.xlane.xlu0 %393
    %395 = vmax.xlane.f32.xlu0 %v374
    %v396 = vpop.xlane.xlu0 %395
    %397 = vmax.xlane.f32.xlu0 %v379
    %v398 = vpop.xlane.xlu0 %397
    %399 = vmax.xlane.f32.xlu0 %v382
    %v400 = vpop.xlane.xlu0 %399
    %v401 = vmax.f32 %v389, %v394
    %v402 = vmax.f32 %v390, %v396
    %v403 = vmax.f32 %v391, %v398
    %v404 = vmax.f32 %v392, %v400
    %v405 = vld [vmem:[#allocation4] sm:$0xff]
    %v406 = vld [vmem:[#allocation4 + $0x8] sm:$0xff]
    %v407 = vld [vmem:[#allocation4 + $0x10] sm:$0xff]
    %v408 = vld [vmem:[#allocation4 + $0x18] sm:$0xff]
    %v409 = vsub.f32 %v389, %v401
    %v410 = vsub.f32 %v390, %v402
    %v411 = vsub.f32 %v391, %v403
    %v412 = vsub.f32 %v392, %v404
    %v413 = vmul.f32 %v409, 1.442695
    %v414 = vpow.pop %v413
    %v415 = vmul.f32 %v410, 1.442695
    %v416 = vpow.pop %v415
    %v417 = vmul.f32 %v411, 1.442695
    %v418 = vpow.pop %v417
    %v419 = vmul.f32 %v412, 1.442695
    %v420 = vpow.pop %v419
    %v421 = vmul.f32 %v405, %v414
    %v422 = vmul.f32 %v406, %v416
    %v423 = vmul.f32 %v407, %v418
    %v424 = vmul.f32 %v408, %v420
    %426 = vset.pattern.permute.xlu0 0
    %427 = vperm.xlu0 %426, %v401
    %v428 = vpop.permute.xlu0 %427
    %431 = vset.pattern.permute.xlu0 0
    %432 = vperm.xlu0 %431, %v402
    %v433 = vpop.permute.xlu0 %432
    %436 = vset.pattern.permute.xlu0 0
    %437 = vperm.xlu0 %436, %v403
    %v438 = vpop.permute.xlu0 %437
    %441 = vset.pattern.permute.xlu0 0
    %442 = vperm.xlu0 %441, %v404
    %v443 = vpop.permute.xlu0 %442
    %v445 = vsub.f32 %v371, %v428
    %v446 = vsub.f32 %v374, %v433
    %v447 = vsub.f32 %v379, %v438
    %v448 = vsub.f32 %v382, %v443
    %v449 = vmul.f32 %v445, 1.442695
    %v450 = vpow.pop %v449
    %v451 = vmul.f32 %v446, 1.442695
    %v452 = vpow.pop %v451
    %v453 = vmul.f32 %v447, 1.442695
    %v454 = vpow.pop %v453
    %v455 = vmul.f32 %v448, 1.442695
    %v456 = vpow.pop %v455
    %457 = vadd.xlane.f32.xlu0 %v450
    %v458 = vpop.xlane.xlu0 %457
    %459 = vadd.xlane.f32.xlu0 %v452
    %v460 = vpop.xlane.xlu0 %459
    %461 = vadd.xlane.f32.xlu0 %v454
    %v462 = vpop.xlane.xlu0 %461
    %463 = vadd.xlane.f32.xlu0 %v456
    %v464 = vpop.xlane.xlu0 %463
    %v465 = vadd.f32 %v421, %v458
    %v466 = vadd.f32 %v422, %v460
    %v467 = vadd.f32 %v423, %v462
    %v468 = vadd.f32 %v424, %v464
    %vm469 = vcmask 7168
    %470 = vst.msk [vmem:[#allocation4] sm:$0xff] %vm469, %v465
    %471 = vst.msk [vmem:[#allocation4 + $0x8] sm:$0xff] %vm469, %v466
    %472 = vst.msk [vmem:[#allocation4 + $0x10] sm:$0xff] %vm469, %v467
    %473 = vst.msk [vmem:[#allocation4 + $0x18] sm:$0xff] %vm469, %v468
    %474 = vst.msk [vmem:[#allocation3] sm:$0xff] %vm469, %v401
    %475 = vst.msk [vmem:[#allocation3 + $0x8] sm:$0xff] %vm469, %v402
    %476 = vst.msk [vmem:[#allocation3 + $0x10] sm:$0xff] %vm469, %v403
    %477 = vst.msk [vmem:[#allocation3 + $0x18] sm:$0xff] %vm469, %v404
    %s478 = smul.u32 0, 128
    %v479 = vstv %s478
    %v480 = vsub.s32 %v385, %v479
    %v481 = vsub.s32 %v386, %v479
    %v482 = vsub.s32 %v387, %v479
    %v483 = vsub.s32 %v388, %v479
    %v484 = vlaneseq
    %v485 = vand.u32 %v484, 127
    %v486 = vld [vmem:[#allocation5] sm:$0xff]
    %v487 = vld [vmem:[#allocation5 + $0x8] sm:$0xff]
    %v488 = vld [vmem:[#allocation5 + $0x10] sm:$0xff]
    %v489 = vld [vmem:[#allocation5 + $0x18] sm:$0xff]
    %490 = vset.pattern.permute.xlu0 0
    %491 = vperm.xlu0 %490, %v480
    %v492 = vpop.permute.xlu0 %491
    %493 = vset.pattern.permute.xlu0 0
    %494 = vperm.xlu0 %493, %v481
    %v495 = vpop.permute.xlu0 %494
    %496 = vset.pattern.permute.xlu0 0
    %497 = vperm.xlu0 %496, %v482
    %v498 = vpop.permute.xlu0 %497
    %499 = vset.pattern.permute.xlu0 0
    %500 = vperm.xlu0 %499, %v483
    %v501 = vpop.permute.xlu0 %500
    %vm502 = vcmp.eq.s32.totalorder %v485, %v492
    %vm503 = vcmp.eq.s32.totalorder %v485, %v495
    %vm504 = vcmp.eq.s32.totalorder %v485, %v498
    %vm505 = vcmp.eq.s32.totalorder %v485, %v501
    %v506 = vsel %vm502, %v371, 0.0
    %v507 = vsel %vm503, %v374, 0.0
    %v508 = vsel %vm504, %v379, 0.0
    %v509 = vsel %vm505, %v382, 0.0
    %510 = vadd.xlane.f32.xlu0 %v506
    %v511 = vpop.xlane.xlu0 %510
    %512 = vadd.xlane.f32.xlu0 %v507
    %v513 = vpop.xlane.xlu0 %512
    %514 = vadd.xlane.f32.xlu0 %v508
    %v515 = vpop.xlane.xlu0 %514
    %516 = vadd.xlane.f32.xlu0 %v509
    %v517 = vpop.xlane.xlu0 %516
    %v518 = vadd.f32 %v486, %v511
    %v519 = vadd.f32 %v487, %v513
    %v520 = vadd.f32 %v488, %v515
    %v521 = vadd.f32 %v489, %v517
    %522 = vst.msk [vmem:[#allocation5] sm:$0xff] %vm469, %v518
    %523 = vst.msk [vmem:[#allocation5 + $0x8] sm:$0xff] %vm469, %v519
    %524 = vst.msk [vmem:[#allocation5 + $0x10] sm:$0xff] %vm469, %v520
    %525 = vst.msk [vmem:[#allocation5 + $0x18] sm:$0xff] %vm469, %v521
    // Predicated region
    $region38: #{tpu_custom_call.1} parent=1 // pred_check
      %p526 = pneg %p31
    $region39: #{tpu_custom_call.1} parent=1 // pred_check_branch
      %528 = sbr.rel (%p526) target = $region41
    $region40: #{tpu_custom_call.1} parent=1 // pred_region
      %v529 = vld [vmem:[#allocation3] sm:$0xff]
      %v530 = vld [vmem:[#allocation3 + $0x8] sm:$0xff]
      %v531 = vld [vmem:[#allocation3 + $0x10] sm:$0xff]
      %v532 = vld [vmem:[#allocation3 + $0x18] sm:$0xff]
      %v533 = vld [vmem:[#allocation4] sm:$0xff]
      %v534 = vld [vmem:[#allocation4 + $0x8] sm:$0xff]
      %v535 = vld [vmem:[#allocation4 + $0x10] sm:$0xff]
      %v536 = vld [vmem:[#allocation4 + $0x18] sm:$0xff]
      %v537 = vlog2.pop %v533
      %v538 = vmul.f32 %v537, 0.6931472
      %v539 = vlog2.pop %v534
      %v540 = vmul.f32 %v539, 0.6931472
      %v541 = vlog2.pop %v535
      %v542 = vmul.f32 %v541, 0.6931472
      %v543 = vlog2.pop %v536
      %v544 = vmul.f32 %v543, 0.6931472
      %v545 = vadd.f32 %v529, %v538
      %v546 = vadd.f32 %v530, %v540
      %v547 = vadd.f32 %v531, %v542
      %v548 = vadd.f32 %v532, %v544
      %v549 = vld [vmem:[#allocation5] sm:$0xff]
      %v550 = vld [vmem:[#allocation5 + $0x8] sm:$0xff]
      %v551 = vld [vmem:[#allocation5 + $0x10] sm:$0xff]
      %v552 = vld [vmem:[#allocation5 + $0x18] sm:$0xff]
      %v553 = vsub.f32 %v549, %v545
      %v554 = vsub.f32 %v550, %v546
      %v555 = vsub.f32 %v551, %v547
      %v556 = vsub.f32 %v552, %v548
      %vm557 = vcmp.ne.s32.totalorder %v385, 0
      %vm558 = vcmp.ne.s32.totalorder %v386, 0
      %vm559 = vcmp.ne.s32.totalorder %v387, 0
      %vm560 = vcmp.ne.s32.totalorder %v388, 0
      %v561 = vsel %vm557, 1, 0
      %v562 = vsel %vm558, 1, 0
      %v563 = vsel %vm559, 1, 0
      %v564 = vsel %vm560, 1, 0
      %v565 = vcvt.s32.f32 %v561
      %v566 = vcvt.s32.f32 %v562
      %v567 = vcvt.s32.f32 %v563
      %v568 = vcvt.s32.f32 %v564
      %v569 = vmul.f32 %v553, %v565
      %v570 = vmul.f32 %v554, %v566
      %v571 = vmul.f32 %v555, %v567
      %v572 = vmul.f32 %v556, %v568
      %v573 = vlaneseq
      %v574 = vshrl.u32 %v573, 7
      %v575 = vadd.s32 %v574, 8
      %v576 = vadd.s32 %v574, 16
      %v577 = vadd.s32 %v574, 24
      %v578 = vmul.u32 %v485, 8
      %vm579 = vcmp.ge.s32.totalorder %v574, %v578
      %vm580 = vcmp.ge.s32.totalorder %v575, %v578
      %vm581 = vcmp.ge.s32.totalorder %v576, %v578
      %vm582 = vcmp.ge.s32.totalorder %v577, %v578
      %v583 = vadd.s32 %v485, 1
      %v584 = vmul.u32 %v583, 8
      %vm585 = vcmp.lt.s32.totalorder %v574, %v584
      %vm586 = vcmp.lt.s32.totalorder %v575, %v584
      %vm587 = vcmp.lt.s32.totalorder %v576, %v584
      %vm588 = vcmp.lt.s32.totalorder %v577, %v584
      %vm589 = vmand %vm579, %vm585
      %vm590 = vmand %vm580, %vm586
      %vm591 = vmand %vm581, %vm587
      %vm592 = vmand %vm582, %vm588
      %594 = vset.pattern.permute.xlu0 0
      %595 = vperm.xlu0 %594, %v569
      %v596 = vpop.permute.xlu0 %595
      %599 = vset.pattern.permute.xlu0 0
      %600 = vperm.xlu0 %599, %v570
      %v601 = vpop.permute.xlu0 %600
      %604 = vset.pattern.permute.xlu0 0
      %605 = vperm.xlu0 %604, %v571
      %v606 = vpop.permute.xlu0 %605
      %609 = vset.pattern.permute.xlu0 0
      %610 = vperm.xlu0 %609, %v572
      %v611 = vpop.permute.xlu0 %610
      %v613 = vsel %vm589, %v596, 0.0
      %v614 = vsel %vm590, %v601, 0.0
      %v615 = vsel %vm591, %v606, 0.0
      %v616 = vsel %vm592, %v611, 0.0
      %v617 = vadd.f32 %v613, %v614
      %v618 = vadd.f32 %v617, %v615
      %v619 = vadd.f32 %v618, %v616
      %v620 = vrot.slane %v619, 4
      %v621 = vadd.f32 %v619, %v620
      %v622 = vrot.slane %v621, 2
      %v623 = vadd.f32 %v621, %v622
      %v624 = vrot.slane %v623, 1
      %v625 = vadd.f32 %v623, %v624
      %627 = vset.pattern.permute.xlu0 0
      %628 = vperm.xlu0 %627, %v565
      %v629 = vpop.permute.xlu0 %628
      %632 = vset.pattern.permute.xlu0 0
      %633 = vperm.xlu0 %632, %v566
      %v634 = vpop.permute.xlu0 %633
      %637 = vset.pattern.permute.xlu0 0
      %638 = vperm.xlu0 %637, %v567
      %v639 = vpop.permute.xlu0 %638
      %642 = vset.pattern.permute.xlu0 0
      %643 = vperm.xlu0 %642, %v568
      %v644 = vpop.permute.xlu0 %643
      %v646 = vsel %vm589, %v629, 0.0
      %v647 = vsel %vm590, %v634, 0.0
      %v648 = vsel %vm591, %v639, 0.0
      %v649 = vsel %vm592, %v644, 0.0
      %v650 = vadd.f32 %v646, %v647
      %v651 = vadd.f32 %v650, %v648
      %v652 = vadd.f32 %v651, %v649
      %v653 = vrot.slane %v652, 4
      %v654 = vadd.f32 %v652, %v653
      %v655 = vrot.slane %v654, 2
      %v656 = vadd.f32 %v654, %v655
      %v657 = vrot.slane %v656, 1
      %v658 = vadd.f32 %v656, %v657
      %vm659 = vcmp.lt.s32.totalorder %v485, 4
      %v660 = vsel %vm659, %v658, 1.0
      %v661 = vrcp.pop %v660
      %v662 = vmul.f32 %v625, %v661
      %663 = vst [vmem:[#allocation6] sm:$0x1] %v662
    $region41: #{tpu_custom_call.1} parent=1 // pred_fallthru
      _
    // Predicated region
    $region42: #{tpu_custom_call.1} parent=1 // pred_check
      _
    $region43: #{tpu_custom_call.1} parent=1 // pred_check_branch
      %665 = sbr.rel (0) target = $region45
    $region44: #{tpu_custom_call.1} parent=1 // pred_region
      %s667 = ssub.s32 16, 16
      %668 = vsyncadd [#allocation7], %s667
      %s670 = sshll.u32 [#allocation6], 4
      %s671 = int_to_ptr.vmem [resolvable:$true] %s670
      %673 = dma.vmem_to_hbm [thread:$0]  %s671, 16, %s8, [#allocation7]
    $region45: #{tpu_custom_call.1} parent=1 // pred_fallthru
      _
    // Predicated region
    $region46: #{tpu_custom_call.1} parent=1 // pred_check
      _
    $region47: #{tpu_custom_call.1} parent=1 // pred_check_branch
      %675 = sbr.rel (0) target = $region49
    $region48: #{tpu_custom_call.1} parent=1 // pred_region
      %676 = dma.done [#allocation7], 16
    $region49: #{tpu_custom_call.1} parent=1 // pred_fallthru
      _
    %677 = vsyncpa [#allocation7], 1

</llo_original>
